<compile_context>
chip_gen: v6e
topology: v6e:2x2x1
jax: 0.10.0
libtpu: 0.0.40
codegen_flags: <defaults>
</compile_context>

<pallas_src>
import jax
import jax.numpy as jnp
from jax import lax
from jax.experimental import pallas as pl
from jax.experimental.pallas import tpu as pltpu


_TARGET_TILE_BYTES = 8 * 1024 * 1024    # ~8 MiB of input per grid step
_VMEM_BLOCK_BUDGET = 24 * 1024 * 1024   # 2x-buffered blocks + accumulator budget
_VMEM_LIMIT_BYTES = 32 * 1024 * 1024    # safe on v5e/v6e (128 MiB) and v7x (64 MiB)
_BASE_L_TILE = 2048                     # default reduction step (lanes)
_MAX_L_TILE = 16384                     # cap (bounds the unrolled lane-group adds)


def _round_up(a, b):
    return (a + b - 1) // b * b


def _row_mult(itemsize):
    # sublane multiple: 8 (f32) / 16 (bf16) / 32 (int8)
    return max(8, 32 // itemsize)


def _choose_rows(n_rows, in_lanes, out_lanes, itemsize, row_mult, acc_lanes):
    """Row-block height from the VMEM-padded per-row footprint."""
    in_row = _round_up(max(in_lanes, 1), 128) * itemsize     # lane-padded bytes
    out_row = _round_up(max(out_lanes, 1), 128) * itemsize
    acc_row = acc_lanes * 4
    by_target = _TARGET_TILE_BYTES // in_row
    by_vmem = _VMEM_BLOCK_BUDGET // (2 * in_row + 2 * out_row + acc_row)
    rows = max(row_mult, min(by_target, by_vmem))
    rows = _round_up(rows, row_mult)
    if rows >= n_rows:
        rows = n_rows
    # v7x has 2 TensorCores: give the "parallel" row axis >= 2 blocks whenever
    # the row count allows reasonably shaped blocks.
    if rows == n_rows and n_rows >= 2 * row_mult:
        rows = _round_up((n_rows + 1) // 2, row_mult)
    return rows


def _plan_l(R, L, itemsize, row_mult):
    """Return (l_tile, grid_l) for the generic row-reduction path."""
    if L <= _BASE_L_TILE:
        return L, 1
    # Small R / long rows: a full-L block of every (padded) row fits the target.
    if _round_up(R, row_mult) * _round_up(L, 128) * itemsize <= _TARGET_TILE_BYTES:
        return L, 1
    want = _TARGET_TILE_BYTES // max(1, _round_up(R, row_mult) * itemsize)
    l_tile = max(_BASE_L_TILE, min(_MAX_L_TILE, (want // 128) * 128))
    if l_tile >= L:
        return L, 1
    return l_tile, -(-L // l_tile)


def _small_l_pack(R, L, dtype):
    """Pack factor h for the small-L path, or None if it does not apply."""
    if L <= 0 or L >= 128 or 128 % L != 0:
        return None
    if not jnp.issubdtype(dtype, jnp.floating):
        return None
    g0 = 128 // L                        # original rows per 128-lane group
    if R % g0 != 0:
        return None
    m_max = min(L, 16, R // g0)          # h <= 128 and h*L <= 2048 lanes
    for m in range(m_max, 0, -1):
        if R % (g0 * m) == 0:
            return g0 * m
    return None


def _block_diag_ones(W, h, L, dtype):
    """(W, h) matrix with B[w, s] = 1 iff lane w belongs to segment s."""
    seg = jnp.arange(W, dtype=jnp.int32) // L
    return (seg[:, None] == jnp.arange(h, dtype=jnp.int32)[None, :]).astype(dtype)


# --------------------------------------------------------------------------- #
# Kernels
# --------------------------------------------------------------------------- #
def _packed_sum_kernel(x_ref, b_ref, o_ref):
    # (rows, h*L) @ (h*L, h) block-diagonal ones -> per-original-row sums with a
    # lane-dense output block.  HIGHEST keeps full f32 product precision.
    prec = (lax.Precision.HIGHEST if x_ref.dtype == jnp.float32
            else lax.Precision.DEFAULT)
    o_ref[...] = jnp.dot(
        x_ref[...], b_ref[...],
        preferred_element_type=jnp.float32, precision=prec,
    ).astype(o_ref.dtype)


def _make_single_pass_kernel(acc_dtype):
    """L fits one block: one cross-lane reduce per row tile, no accumulator."""
    def kernel(x_ref, o_ref):
        x = x_ref[...].astype(acc_dtype)
        o_ref[...] = jnp.sum(x, axis=-1, keepdims=True).astype(o_ref.dtype)
    return kernel


def _make_reduction_kernel(L, l_tile, acc_dtype):
    """L tiled over the last grid axis; (rows, 128) accumulator in VMEM."""
    n_groups = l_tile // 128             # l_tile is a multiple of 128 here
    masked_tail = (L % l_tile) != 0

    def lane_group_sum(x):
        # VPU adds of 128-lane groups; the cross-lane (XLU) reduce is deferred
        # to the finalize branch.
        part = x[:, 0:128]
        for j in range(1, n_groups):
            part = part + x[:, j * 128:(j + 1) * 128]
        return part

    def kernel(x_ref, o_ref, acc_ref):
        k = pl.program_id(1)
        nk = pl.num_programs(1)

        @pl.when(k == 0)
        def _init():
            acc_ref[...] = jnp.zeros_like(acc_ref)

        x = x_ref[...].astype(acc_dtype)

        if masked_tail:
            # Mask only the final (partial) L tile; every other step takes the
            # plain unmasked path.
            @pl.when(k < nk - 1)
            def _full():
                acc_ref[...] += lane_group_sum(x)

            @pl.when(k == nk - 1)
            def _tail():
                col = lax.broadcasted_iota(jnp.int32, x.shape, 1) + k * l_tile
                acc_ref[...] += lane_group_sum(
                    jnp.where(col < L, x, jnp.zeros_like(x)))
        else:
            acc_ref[...] += lane_group_sum(x)

        @pl.when(k == nk - 1)
        def _finalize():
            o_ref[...] = jnp.sum(
                acc_ref[...], axis=-1, keepdims=True).astype(o_ref.dtype)

    return kernel


# --------------------------------------------------------------------------- #
# Wrapper
# --------------------------------------------------------------------------- #
def sum_pool_1d(x: jax.Array) -> jax.Array:
    """torch.sum(x, dims=(-1,)) as a Pallas TPU kernel (any rank >= 1)."""
    orig_shape = x.shape
    L = int(orig_shape[-1])
    R = 1
    for d in orig_shape[:-1]:
        R *= int(d)

    itemsize = jnp.dtype(x.dtype).itemsize
    row_mult = _row_mult(itemsize)
    acc_dtype = jnp.float32 if jnp.issubdtype(x.dtype, jnp.floating) else jnp.int32

    h = _small_l_pack(R, L, x.dtype)
    if h is not None:
        # ---- small-L packed path (lane-dense DMA + MXU segmented sum) -------
        W = h * L                        # packed lane width (multiple of 128)
        Rp = R // h
        x_p = x.reshape(Rp, W)           # free: contiguous row-major reshape
        b = _block_diag_ones(W, h, L, x.dtype)
        rows = _choose_rows(Rp, W, h, itemsize, row_mult, acc_lanes=0)
        grid_rows = pl.cdiv(Rp, rows)
        cost = pl.CostEstimate(
            flops=2 * Rp * W * h, transcendentals=0,
            bytes_accessed=R * L * itemsize + R * itemsize + W * h * itemsize)
        out2 = pl.pallas_call(
            _packed_sum_kernel,
            out_shape=jax.ShapeDtypeStruct((Rp, h), x.dtype),
            grid=(grid_rows,),
            in_specs=[pl.BlockSpec((rows, W), lambda i: (i, 0)),
                      pl.BlockSpec((W, h), lambda i: (0, 0))],
            out_specs=pl.BlockSpec((rows, h), lambda i: (i, 0)),
            compiler_params=pltpu.CompilerParams(
                dimension_semantics=("parallel",),
                vmem_limit_bytes=_VMEM_LIMIT_BYTES),
            cost_estimate=cost,
        )(x_p, b)
        return out2.reshape(orig_shape[:-1])

    # ---- generic row-reduction path ----------------------------------------
    # TODO(synk): small L with R not divisible by 128//L (or integer dtypes)
    # still uses lane-sparse (rows, L) input blocks and a (rows, 1) output.
    x2 = x.reshape(R, L)
    l_tile, grid_l = _plan_l(R, L, itemsize, row_mult)
    acc_lanes = 128 if grid_l > 1 else 0
    rows = _choose_rows(R, l_tile, 1, itemsize, row_mult, acc_lanes)
    grid_rows = pl.cdiv(R, rows)
    out_shape = jax.ShapeDtypeStruct((R, 1), x.dtype)
    cost = pl.CostEstimate(flops=R * L, transcendentals=0,
                           bytes_accessed=R * L * itemsize + R * itemsize)

    if grid_l == 1:
        # Output traffic is <= 1/L of input traffic here, so the lane-sparse
        # (rows, 1) store stays hidden under the input DMA stream.
        out2 = pl.pallas_call(
            _make_single_pass_kernel(acc_dtype),
            out_shape=out_shape,
            grid=(grid_rows,),
            in_specs=[pl.BlockSpec((rows, L), lambda i: (i, 0))],
            out_specs=pl.BlockSpec((rows, 1), lambda i: (i, 0)),
            compiler_params=pltpu.CompilerParams(
                dimension_semantics=("parallel",),
                vmem_limit_bytes=_VMEM_LIMIT_BYTES),
            cost_estimate=cost,
        )(x2)
    else:
        out2 = pl.pallas_call(
            _make_reduction_kernel(L, l_tile, acc_dtype),
            out_shape=out_shape,
            grid=(grid_rows, grid_l),
            in_specs=[pl.BlockSpec((rows, l_tile), lambda i, k: (i, k))],
            out_specs=pl.BlockSpec((rows, 1), lambda i, k: (i, 0)),
            scratch_shapes=[pltpu.VMEM((rows, 128), acc_dtype)],
            compiler_params=pltpu.CompilerParams(
                dimension_semantics=("parallel", "arbitrary"),
                vmem_limit_bytes=_VMEM_LIMIT_BYTES),
            cost_estimate=cost,
        )(x2)

    # TODO(synk): only the module default dims=(-1,) is implemented; arbitrary
    # `dims` tuples would need a different tiling / multi-axis reduction.
    return out2.reshape(orig_shape[:-1])


if __name__ == "__main__":
    key = jax.random.PRNGKey(0)
    ks = jax.random.split(key, 8)

    def check(x, name, atol, rtol=1e-5):
        out = jax.block_until_ready(sum_pool_1d(x))
        ref = jnp.sum(x.astype(jnp.float32), axis=-1)
        assert out.shape == ref.shape, (name, out.shape, ref.shape)
        assert out.dtype == x.dtype, (name, out.dtype, x.dtype)
        assert jnp.allclose(out.astype(jnp.float32), ref, atol=atol, rtol=rtol), \
            f"mismatch: {name}"

    # Primary, module-consistent shape (batch=2, channels=4, L=16): packed path.
    check(jax.random.normal(ks[0], (2, 4, 16), dtype=jnp.float32),
          "small f32", atol=1e-4)
    # Packed path with a fully lane-dense (h=128) output block.
    check(jax.random.normal(ks[1], (4, 64, 16), dtype=jnp.float32),
          "packed h=128", atol=1e-4)
    # bf16 through the packed path (MXU bf16 dot, f32 accumulation).
    check(jax.random.normal(ks[2], (2, 16, 32), dtype=jnp.bfloat16),
          "packed bf16", atol=0.25, rtol=5e-2)
    # Generic single-pass path (full-L blocks, megacore row split).
    check(jax.random.normal(ks[3], (2, 64, 4096), dtype=jnp.float32),
          "single-pass f32", atol=5e-3)
    # Generic tiled-reduction path: resident accumulator, pl.when init/finalize,
    # masked final partial L tile, >=2 parallel row blocks.
    check(jax.random.normal(ks[4], (8, 64, 5000), dtype=jnp.float32),
          "tiled f32", atol=1e-2)
    # Ragged rows (R=15, not a multiple of 8) and L not a multiple of 128.
    check(jax.random.normal(ks[5], (3, 5, 2500), dtype=jnp.float32),
          "ragged f32", atol=5e-3)
    # bf16 through the generic path (f32 accumulation in-kernel, bf16 store).
    check(jax.random.normal(ks[6], (2, 8, 512), dtype=jnp.bfloat16),
          "generic bf16", atol=0.5, rtol=5e-2)

    print("KERNEL_OK")
</pallas_src>

<mosaic_0001>
module attributes {stable_mosaic.version = 11 : i64} {
  func.func @_packed_sum_kernel(%arg0: i32, %arg1: memref<1x128xf32, #tpu.memory_space<vmem>>, %arg2: memref<128x8xf32, #tpu.memory_space<vmem>>, %arg3: memref<1x8xf32, #tpu.memory_space<vmem>>) attributes {dimension_semantics = [#tpu.dimension_semantics<parallel>], iteration_bounds = array<i64: 1>, scalar_prefetch = 0 : i64, scratch_operands = 0 : i64, tpu.core_type = #tpu.core_type<tc>, window_params = [{transform_indices = @transform_0, window_bounds = array<i64: 1, 128>}, {pipeline_mode = #tpu.pipeline_mode<synchronous>, transform_indices = @transform_1, window_bounds = array<i64: 128, 8>}, {transform_indices = @transform_2, window_bounds = array<i64: 1, 8>}]} {
    %c0 = arith.constant 0 : index
    %c0_0 = arith.constant 0 : index
    %0 = vector.load %arg1[%c0, %c0_0] : memref<1x128xf32, #tpu.memory_space<vmem>>, vector<1x128xf32>
    %c0_1 = arith.constant 0 : index
    %c0_2 = arith.constant 0 : index
    %1 = vector.load %arg2[%c0_1, %c0_2] : memref<128x8xf32, #tpu.memory_space<vmem>>, vector<128x8xf32>
    %cst = arith.constant dense<0.000000e+00> : vector<1x8xf32>
    %2 = tpu.matmul %0, %1, %cst {dimension_numbers = #tpu.dot_dimension_numbers<[1], [0], [0], [1], [0, 0, 1, 1], [], []>, precision = #tpu.contract_precision<fp32>} : vector<1x128xf32>, vector<128x8xf32>, vector<1x8xf32> -> vector<1x8xf32>
    %c0_3 = arith.constant 0 : index
    %c0_4 = arith.constant 0 : index
    %3 = vector.load %arg3[%c0_3, %c0_4] : memref<1x8xf32, #tpu.memory_space<vmem>>, vector<1x8xf32>
    tpu.vector_store %arg3[%c0_3, %c0_4], %2 {strides = array<i32>} : memref<1x8xf32, #tpu.memory_space<vmem>>, vector<1x8xf32>,
    return
  }
  func.func @transform_0(%arg0: i32) -> (i32, i32) {
    %c0_i32 = arith.constant 0 : i32
    %c0_i32_0 = arith.constant 0 : i32
    return %arg0, %c0_i32 : i32, i32
  }
  func.func @transform_1(%arg0: i32) -> (i32, i32) {
    %c0_i32 = arith.constant 0 : i32
    %c0_i32_0 = arith.constant 0 : i32
    %c0_i32_1 = arith.constant 0 : i32
    return %c0_i32, %c0_i32_0 : i32, i32
  }
  func.func @transform_2(%arg0: i32) -> (i32, i32) {
    %c0_i32 = arith.constant 0 : i32
    %c0_i32_0 = arith.constant 0 : i32
    return %arg0, %c0_i32 : i32, i32
  }
}

</mosaic_0001>

<llo_original>
// kernel: tpu_custom_call.1
$region0: #{tpu_custom_call.1}
  #allocation0 [shape = 'u32[]', space=smem, size = 0x4, offset = 0x4, fixed_abs, tag = 'smem constant byte address 0x4 - core index']
  #allocation1 [shape = 'u32[144,128]{1,0:T(1,128)}', space=vmem, size = 0x12000, scoped, tag = 'internal scratch']
  %s0 = inlined_call_operand.vmem [shape: f32[1,128], index: 0, kind: input, shape index: {}]
  %s1 = inlined_call_operand.vmem [shape: f32[128,8], index: 1, kind: input, shape index: {}]
  %s2 = inlined_call_operand.hbm [shape: f32[1,8], index: 2, kind: output, shape index: {}]
  %s3 = sld [smem:[#allocation0]]
  $region18: #{tpu_custom_call.1} parent=0
    _
  %s5 = ssub.s32 1, %s3
  %s6 = scalar_select 0, %s5, %s3
  $region1: #{tpu_custom_call.1} parent=0
    #allocation2 [shape = 'u8[512]{0}', space=vmem, size = 0x400, scoped, tag = 'output window, operand 0, single buffered']
    #allocation3 [shape = 's32[1]{0}', space=sflag, size = 0x4, scoped, tag = 'scoped memory for tpu_custom_call.1']
    %7 = vsyncpa [#allocation3], 0
    // Predicated region
    $region2: #{tpu_custom_call.1} parent=1 // pred_check
      _
    $region3: #{tpu_custom_call.1} parent=1 // pred_check_branch
      %9 = sbr.rel (0) target = $region5
    $region4: #{tpu_custom_call.1} parent=1 // pred_region
      _
    $region5: #{tpu_custom_call.1} parent=1 // pred_fallthru
      _
    // Predicated region
    $region6: #{tpu_custom_call.1} parent=1 // pred_check
      _
    $region7: #{tpu_custom_call.1} parent=1 // pred_check_branch
      %11 = sbr.rel (0) target = $region9
    $region8: #{tpu_custom_call.1} parent=1 // pred_region
      _
    $region9: #{tpu_custom_call.1} parent=1 // pred_fallthru
      _
    %v12 = vld [vmem:[%s0] sm:$0x1]
    %v13 = vld [vmem:[%s1] sm:$0xff]
    %v14 = vld [vmem:[%s1 + $0x8] sm:$0xff]
    %v15 = vld [vmem:[%s1 + $0x10] sm:$0xff]
    %v16 = vld [vmem:[%s1 + $0x18] sm:$0xff]
    %v17 = vld [vmem:[%s1 + $0x20] sm:$0xff]
    %v18 = vld [vmem:[%s1 + $0x28] sm:$0xff]
    %v19 = vld [vmem:[%s1 + $0x30] sm:$0xff]
    %v20 = vld [vmem:[%s1 + $0x38] sm:$0xff]
    %v21 = vld [vmem:[%s1 + $0x40] sm:$0xff]
    %v22 = vld [vmem:[%s1 + $0x48] sm:$0xff]
    %v23 = vld [vmem:[%s1 + $0x50] sm:$0xff]
    %v24 = vld [vmem:[%s1 + $0x58] sm:$0xff]
    %v25 = vld [vmem:[%s1 + $0x60] sm:$0xff]
    %v26 = vld [vmem:[%s1 + $0x68] sm:$0xff]
    %v27 = vld [vmem:[%s1 + $0x70] sm:$0xff]
    %v28 = vld [vmem:[%s1 + $0x78] sm:$0xff]
    %29 = vmatprep.subr.mxu0 0.0
    %v30 = vand.u32 %v28, 4294901760
    %31 = vmatpush1.msra.mxu0 %v30
    %32 = vmatprep.subr.mxu0 0.0
    %v33 = vand.u32 %v27, 4294901760
    %34 = vmatpush1.msra.mxu0 %v33
    %35 = vmatprep.subr.mxu0 0.0
    %v36 = vand.u32 %v26, 4294901760
    %37 = vmatpush1.msra.mxu0 %v36
    %38 = vmatprep.subr.mxu0 0.0
    %v39 = vand.u32 %v25, 4294901760
    %40 = vmatpush1.msra.mxu0 %v39
    %41 = vmatprep.subr.mxu0 0.0
    %v42 = vand.u32 %v24, 4294901760
    %43 = vmatpush1.msra.mxu0 %v42
    %44 = vmatprep.subr.mxu0 0.0
    %v45 = vand.u32 %v23, 4294901760
    %46 = vmatpush1.msra.mxu0 %v45
    %47 = vmatprep.subr.mxu0 0.0
    %v48 = vand.u32 %v22, 4294901760
    %49 = vmatpush1.msra.mxu0 %v48
    %50 = vmatprep.subr.mxu0 0.0
    %v51 = vand.u32 %v21, 4294901760
    %52 = vmatpush1.msra.mxu0 %v51
    %53 = vmatprep.subr.mxu0 0.0
    %v54 = vand.u32 %v20, 4294901760
    %55 = vmatpush1.msra.mxu0 %v54
    %56 = vmatprep.subr.mxu0 0.0
    %v57 = vand.u32 %v19, 4294901760
    %58 = vmatpush1.msra.mxu0 %v57
    %59 = vmatprep.subr.mxu0 0.0
    %v60 = vand.u32 %v18, 4294901760
    %61 = vmatpush1.msra.mxu0 %v60
    %62 = vmatprep.subr.mxu0 0.0
    %v63 = vand.u32 %v17, 4294901760
    %64 = vmatpush1.msra.mxu0 %v63
    %65 = vmatprep.subr.mxu0 0.0
    %v66 = vand.u32 %v16, 4294901760
    %67 = vmatpush1.msra.mxu0 %v66
    %68 = vmatprep.subr.mxu0 0.0
    %v69 = vand.u32 %v15, 4294901760
    %70 = vmatpush1.msra.mxu0 %v69
    %71 = vmatprep.subr.mxu0 0.0
    %v72 = vand.u32 %v14, 4294901760
    %73 = vmatpush1.msra.mxu0 %v72
    %74 = vmatprep.subr.mxu0 0.0
    %v75 = vand.u32 %v13, 4294901760
    %76 = vmatpush1.msra.mxu0 %v75
    %77 = vmatprep.subr.mxu0 0.0
    %78 = vmatpush2.msra.mxu0 0.0
    %79 = vmatprep.subr.mxu0 0.0
    %80 = vmatpush2.msra.mxu0 0.0
    %81 = vmatprep.subr.mxu0 0.0
    %82 = vmatpush2.msra.mxu0 0.0
    %83 = vmatprep.subr.mxu0 0.0
    %84 = vmatpush2.msra.mxu0 0.0
    %85 = vmatprep.subr.mxu0 0.0
    %86 = vmatpush2.msra.mxu0 0.0
    %87 = vmatprep.subr.mxu0 0.0
    %88 = vmatpush2.msra.mxu0 0.0
    %89 = vmatprep.subr.mxu0 0.0
    %90 = vmatpush2.msra.mxu0 0.0
    %91 = vmatprep.subr.mxu0 0.0
    %92 = vmatpush2.msra.mxu0 0.0
    %93 = vmatprep.subr.mxu0 0.0
    %94 = vmatpush2.msra.mxu0 0.0
    %95 = vmatprep.subr.mxu0 0.0
    %96 = vmatpush2.msra.mxu0 0.0
    %97 = vmatprep.subr.mxu0 0.0
    %98 = vmatpush2.msra.mxu0 0.0
    %99 = vmatprep.subr.mxu0 0.0
    %100 = vmatpush2.msra.mxu0 0.0
    %101 = vmatprep.subr.mxu0 0.0
    %102 = vmatpush2.msra.mxu0 0.0
    %103 = vmatprep.subr.mxu0 0.0
    %104 = vmatpush2.msra.mxu0 0.0
    %105 = vmatprep.subr.mxu0 0.0
    %106 = vmatpush2.msra.mxu0 0.0
    %107 = vmatprep.subr.mxu0 0.0
    %108 = vmatpush2.msra.mxu0 0.0
    %109 = vmatprep.mubr.f32.mxu0 0.0
    %v110 = vand.u32 %v12, 4294901760
    %v111 = vsub.f32 %v12, %v110
    %v112 = vand.u32 %v111, 4294901760
    %v113 = vsub.f32 %v111, %v112
    %v114 = vand.u32 %v113, 4294901760
    %115 = vmatmul.mubr.f32.gmra.mxu0 %v114
    %v116 = vpop.f32.mrf.mxu0
    %v117 = vadd.f32 0.0, %v116
    %v118 = vpop.f32.mrf.mxu0
    %119 = vdwg.mxu0
    %120 = vmatprep.subr.mxu0 0.0
    %v121 = vand.u32 %v28, 4294901760
    %v122 = vsub.f32 %v28, %v121
    %v123 = vand.u32 %v122, 4294901760
    %v124 = vsub.f32 %v122, %v123
    %v125 = vand.u32 %v124, 4294901760
    %126 = vmatpush1.msra.mxu0 %v125
    %127 = vmatprep.subr.mxu0 0.0
    %v128 = vand.u32 %v27, 4294901760
    %v129 = vsub.f32 %v27, %v128
    %v130 = vand.u32 %v129, 4294901760
    %v131 = vsub.f32 %v129, %v130
    %v132 = vand.u32 %v131, 4294901760
    %133 = vmatpush1.msra.mxu0 %v132
    %134 = vmatprep.subr.mxu0 0.0
    %v135 = vand.u32 %v26, 4294901760
    %v136 = vsub.f32 %v26, %v135
    %v137 = vand.u32 %v136, 4294901760
    %v138 = vsub.f32 %v136, %v137
    %v139 = vand.u32 %v138, 4294901760
    %140 = vmatpush1.msra.mxu0 %v139
    %141 = vmatprep.subr.mxu0 0.0
    %v142 = vand.u32 %v25, 4294901760
    %v143 = vsub.f32 %v25, %v142
    %v144 = vand.u32 %v143, 4294901760
    %v145 = vsub.f32 %v143, %v144
    %v146 = vand.u32 %v145, 4294901760
    %147 = vmatpush1.msra.mxu0 %v146
    %148 = vmatprep.subr.mxu0 0.0
    %v149 = vand.u32 %v24, 4294901760
    %v150 = vsub.f32 %v24, %v149
    %v151 = vand.u32 %v150, 4294901760
    %v152 = vsub.f32 %v150, %v151
    %v153 = vand.u32 %v152, 4294901760
    %154 = vmatpush1.msra.mxu0 %v153
    %155 = vmatprep.subr.mxu0 0.0
    %v156 = vand.u32 %v23, 4294901760
    %v157 = vsub.f32 %v23, %v156
    %v158 = vand.u32 %v157, 4294901760
    %v159 = vsub.f32 %v157, %v158
    %v160 = vand.u32 %v159, 4294901760
    %161 = vmatpush1.msra.mxu0 %v160
    %162 = vmatprep.subr.mxu0 0.0
    %v163 = vand.u32 %v22, 4294901760
    %v164 = vsub.f32 %v22, %v163
    %v165 = vand.u32 %v164, 4294901760
    %v166 = vsub.f32 %v164, %v165
    %v167 = vand.u32 %v166, 4294901760
    %168 = vmatpush1.msra.mxu0 %v167
    %169 = vmatprep.subr.mxu0 0.0
    %v170 = vand.u32 %v21, 4294901760
    %v171 = vsub.f32 %v21, %v170
    %v172 = vand.u32 %v171, 4294901760
    %v173 = vsub.f32 %v171, %v172
    %v174 = vand.u32 %v173, 4294901760
    %175 = vmatpush1.msra.mxu0 %v174
    %176 = vmatprep.subr.mxu0 0.0
    %v177 = vand.u32 %v20, 4294901760
    %v178 = vsub.f32 %v20, %v177
    %v179 = vand.u32 %v178, 4294901760
    %v180 = vsub.f32 %v178, %v179
    %v181 = vand.u32 %v180, 4294901760
    %182 = vmatpush1.msra.mxu0 %v181
    %183 = vmatprep.subr.mxu0 0.0
    %v184 = vand.u32 %v19, 4294901760
    %v185 = vsub.f32 %v19, %v184
    %v186 = vand.u32 %v185, 4294901760
    %v187 = vsub.f32 %v185, %v186
    %v188 = vand.u32 %v187, 4294901760
    %189 = vmatpush1.msra.mxu0 %v188
    %190 = vmatprep.subr.mxu0 0.0
    %v191 = vand.u32 %v18, 4294901760
    %v192 = vsub.f32 %v18, %v191
    %v193 = vand.u32 %v192, 4294901760
    %v194 = vsub.f32 %v192, %v193
    %v195 = vand.u32 %v194, 4294901760
    %196 = vmatpush1.msra.mxu0 %v195
    %197 = vmatprep.subr.mxu0 0.0
    %v198 = vand.u32 %v17, 4294901760
    %v199 = vsub.f32 %v17, %v198
    %v200 = vand.u32 %v199, 4294901760
    %v201 = vsub.f32 %v199, %v200
    %v202 = vand.u32 %v201, 4294901760
    %203 = vmatpush1.msra.mxu0 %v202
    %204 = vmatprep.subr.mxu0 0.0
    %v205 = vand.u32 %v16, 4294901760
    %v206 = vsub.f32 %v16, %v205
    %v207 = vand.u32 %v206, 4294901760
    %v208 = vsub.f32 %v206, %v207
    %v209 = vand.u32 %v208, 4294901760
    %210 = vmatpush1.msra.mxu0 %v209
    %211 = vmatprep.subr.mxu0 0.0
    %v212 = vand.u32 %v15, 4294901760
    %v213 = vsub.f32 %v15, %v212
    %v214 = vand.u32 %v213, 4294901760
    %v215 = vsub.f32 %v213, %v214
    %v216 = vand.u32 %v215, 4294901760
    %217 = vmatpush1.msra.mxu0 %v216
    %218 = vmatprep.subr.mxu0 0.0
    %v219 = vand.u32 %v14, 4294901760
    %v220 = vsub.f32 %v14, %v219
    %v221 = vand.u32 %v220, 4294901760
    %v222 = vsub.f32 %v220, %v221
    %v223 = vand.u32 %v222, 4294901760
    %224 = vmatpush1.msra.mxu0 %v223
    %225 = vmatprep.subr.mxu0 0.0
    %v226 = vand.u32 %v13, 4294901760
    %v227 = vsub.f32 %v13, %v226
    %v228 = vand.u32 %v227, 4294901760
    %v229 = vsub.f32 %v227, %v228
    %v230 = vand.u32 %v229, 4294901760
    %231 = vmatpush1.msra.mxu0 %v230
    %232 = vmatprep.subr.mxu0 0.0
    %233 = vmatpush2.msra.mxu0 0.0
    %234 = vmatprep.subr.mxu0 0.0
    %235 = vmatpush2.msra.mxu0 0.0
    %236 = vmatprep.subr.mxu0 0.0
    %237 = vmatpush2.msra.mxu0 0.0
    %238 = vmatprep.subr.mxu0 0.0
    %239 = vmatpush2.msra.mxu0 0.0
    %240 = vmatprep.subr.mxu0 0.0
    %241 = vmatpush2.msra.mxu0 0.0
    %242 = vmatprep.subr.mxu0 0.0
    %243 = vmatpush2.msra.mxu0 0.0
    %244 = vmatprep.subr.mxu0 0.0
    %245 = vmatpush2.msra.mxu0 0.0
    %246 = vmatprep.subr.mxu0 0.0
    %247 = vmatpush2.msra.mxu0 0.0
    %248 = vmatprep.subr.mxu0 0.0
    %249 = vmatpush2.msra.mxu0 0.0
    %250 = vmatprep.subr.mxu0 0.0
    %251 = vmatpush2.msra.mxu0 0.0
    %252 = vmatprep.subr.mxu0 0.0
    %253 = vmatpush2.msra.mxu0 0.0
    %254 = vmatprep.subr.mxu0 0.0
    %255 = vmatpush2.msra.mxu0 0.0
    %256 = vmatprep.subr.mxu0 0.0
    %257 = vmatpush2.msra.mxu0 0.0
    %258 = vmatprep.subr.mxu0 0.0
    %259 = vmatpush2.msra.mxu0 0.0
    %260 = vmatprep.subr.mxu0 0.0
    %261 = vmatpush2.msra.mxu0 0.0
    %262 = vmatprep.subr.mxu0 0.0
    %263 = vmatpush2.msra.mxu0 0.0
    %264 = vmatprep.mubr.f32.mxu0 0.0
    %v265 = vand.u32 %v12, 4294901760
    %266 = vmatmul.mubr.f32.gmra.mxu0 %v265
    %v267 = vpop.f32.mrf.mxu0
    %v268 = vadd.f32 %v117, %v267
    %v269 = vpop.f32.mrf.mxu0
    %270 = vdwg.mxu0
    %271 = vmatprep.subr.mxu0 0.0
    %v272 = vand.u32 %v28, 4294901760
    %v273 = vsub.f32 %v28, %v272
    %274 = vmatpush1.msra.mxu0 %v273
    %275 = vmatprep.subr.mxu0 0.0
    %v276 = vand.u32 %v27, 4294901760
    %v277 = vsub.f32 %v27, %v276
    %278 = vmatpush1.msra.mxu0 %v277
    %279 = vmatprep.subr.mxu0 0.0
    %v280 = vand.u32 %v26, 4294901760
    %v281 = vsub.f32 %v26, %v280
    %282 = vmatpush1.msra.mxu0 %v281
    %283 = vmatprep.subr.mxu0 0.0
    %v284 = vand.u32 %v25, 4294901760
    %v285 = vsub.f32 %v25, %v284
    %286 = vmatpush1.msra.mxu0 %v285
    %287 = vmatprep.subr.mxu0 0.0
    %v288 = vand.u32 %v24, 4294901760
    %v289 = vsub.f32 %v24, %v288
    %290 = vmatpush1.msra.mxu0 %v289
    %291 = vmatprep.subr.mxu0 0.0
    %v292 = vand.u32 %v23, 4294901760
    %v293 = vsub.f32 %v23, %v292
    %294 = vmatpush1.msra.mxu0 %v293
    %295 = vmatprep.subr.mxu0 0.0
    %v296 = vand.u32 %v22, 4294901760
    %v297 = vsub.f32 %v22, %v296
    %298 = vmatpush1.msra.mxu0 %v297
    %299 = vmatprep.subr.mxu0 0.0
    %v300 = vand.u32 %v21, 4294901760
    %v301 = vsub.f32 %v21, %v300
    %302 = vmatpush1.msra.mxu0 %v301
    %303 = vmatprep.subr.mxu0 0.0
    %v304 = vand.u32 %v20, 4294901760
    %v305 = vsub.f32 %v20, %v304
    %306 = vmatpush1.msra.mxu0 %v305
    %307 = vmatprep.subr.mxu0 0.0
    %v308 = vand.u32 %v19, 4294901760
    %v309 = vsub.f32 %v19, %v308
    %310 = vmatpush1.msra.mxu0 %v309
    %311 = vmatprep.subr.mxu0 0.0
    %v312 = vand.u32 %v18, 4294901760
    %v313 = vsub.f32 %v18, %v312
    %314 = vmatpush1.msra.mxu0 %v313
    %315 = vmatprep.subr.mxu0 0.0
    %v316 = vand.u32 %v17, 4294901760
    %v317 = vsub.f32 %v17, %v316
    %318 = vmatpush1.msra.mxu0 %v317
    %319 = vmatprep.subr.mxu0 0.0
    %v320 = vand.u32 %v16, 4294901760
    %v321 = vsub.f32 %v16, %v320
    %322 = vmatpush1.msra.mxu0 %v321
    %323 = vmatprep.subr.mxu0 0.0
    %v324 = vand.u32 %v15, 4294901760
    %v325 = vsub.f32 %v15, %v324
    %326 = vmatpush1.msra.mxu0 %v325
    %327 = vmatprep.subr.mxu0 0.0
    %v328 = vand.u32 %v14, 4294901760
    %v329 = vsub.f32 %v14, %v328
    %330 = vmatpush1.msra.mxu0 %v329
    %331 = vmatprep.subr.mxu0 0.0
    %v332 = vand.u32 %v13, 4294901760
    %v333 = vsub.f32 %v13, %v332
    %334 = vmatpush1.msra.mxu0 %v333
    %335 = vmatprep.subr.mxu0 0.0
    %336 = vmatpush2.msra.mxu0 0.0
    %337 = vmatprep.subr.mxu0 0.0
    %338 = vmatpush2.msra.mxu0 0.0
    %339 = vmatprep.subr.mxu0 0.0
    %340 = vmatpush2.msra.mxu0 0.0
    %341 = vmatprep.subr.mxu0 0.0
    %342 = vmatpush2.msra.mxu0 0.0
    %343 = vmatprep.subr.mxu0 0.0
    %344 = vmatpush2.msra.mxu0 0.0
    %345 = vmatprep.subr.mxu0 0.0
    %346 = vmatpush2.msra.mxu0 0.0
    %347 = vmatprep.subr.mxu0 0.0
    %348 = vmatpush2.msra.mxu0 0.0
    %349 = vmatprep.subr.mxu0 0.0
    %350 = vmatpush2.msra.mxu0 0.0
    %351 = vmatprep.subr.mxu0 0.0
    %352 = vmatpush2.msra.mxu0 0.0
    %353 = vmatprep.subr.mxu0 0.0
    %354 = vmatpush2.msra.mxu0 0.0
    %355 = vmatprep.subr.mxu0 0.0
    %356 = vmatpush2.msra.mxu0 0.0
    %357 = vmatprep.subr.mxu0 0.0
    %358 = vmatpush2.msra.mxu0 0.0
    %359 = vmatprep.subr.mxu0 0.0
    %360 = vmatpush2.msra.mxu0 0.0
    %361 = vmatprep.subr.mxu0 0.0
    %362 = vmatpush2.msra.mxu0 0.0
    %363 = vmatprep.subr.mxu0 0.0
    %364 = vmatpush2.msra.mxu0 0.0
    %365 = vmatprep.subr.mxu0 0.0
    %366 = vmatpush2.msra.mxu0 0.0
    %367 = vmatprep.mubr.f32.mxu0 0.0
    %v368 = vand.u32 %v12, 4294901760
    %v369 = vsub.f32 %v12, %v368
    %370 = vmatmul.mubr.f32.gmra.mxu0 %v369
    %v371 = vpop.f32.mrf.mxu0
    %v372 = vadd.f32 %v268, %v371
    %v373 = vpop.f32.mrf.mxu0
    %374 = vdwg.mxu0
    %375 = vmatprep.subr.mxu0 0.0
    %v376 = vand.u32 %v28, 4294901760
    %377 = vmatpush1.msra.mxu0 %v376
    %378 = vmatprep.subr.mxu0 0.0
    %v379 = vand.u32 %v27, 4294901760
    %380 = vmatpush1.msra.mxu0 %v379
    %381 = vmatprep.subr.mxu0 0.0
    %v382 = vand.u32 %v26, 4294901760
    %383 = vmatpush1.msra.mxu0 %v382
    %384 = vmatprep.subr.mxu0 0.0
    %v385 = vand.u32 %v25, 4294901760
    %386 = vmatpush1.msra.mxu0 %v385
    %387 = vmatprep.subr.mxu0 0.0
    %v388 = vand.u32 %v24, 4294901760
    %389 = vmatpush1.msra.mxu0 %v388
    %390 = vmatprep.subr.mxu0 0.0
    %v391 = vand.u32 %v23, 4294901760
    %392 = vmatpush1.msra.mxu0 %v391
    %393 = vmatprep.subr.mxu0 0.0
    %v394 = vand.u32 %v22, 4294901760
    %395 = vmatpush1.msra.mxu0 %v394
    %396 = vmatprep.subr.mxu0 0.0
    %v397 = vand.u32 %v21, 4294901760
    %398 = vmatpush1.msra.mxu0 %v397
    %399 = vmatprep.subr.mxu0 0.0
    %v400 = vand.u32 %v20, 4294901760
    %401 = vmatpush1.msra.mxu0 %v400
    %402 = vmatprep.subr.mxu0 0.0
    %v403 = vand.u32 %v19, 4294901760
    %404 = vmatpush1.msra.mxu0 %v403
    %405 = vmatprep.subr.mxu0 0.0
    %v406 = vand.u32 %v18, 4294901760
    %407 = vmatpush1.msra.mxu0 %v406
    %408 = vmatprep.subr.mxu0 0.0
    %v409 = vand.u32 %v17, 4294901760
    %410 = vmatpush1.msra.mxu0 %v409
    %411 = vmatprep.subr.mxu0 0.0
    %v412 = vand.u32 %v16, 4294901760
    %413 = vmatpush1.msra.mxu0 %v412
    %414 = vmatprep.subr.mxu0 0.0
    %v415 = vand.u32 %v15, 4294901760
    %416 = vmatpush1.msra.mxu0 %v415
    %417 = vmatprep.subr.mxu0 0.0
    %v418 = vand.u32 %v14, 4294901760
    %419 = vmatpush1.msra.mxu0 %v418
    %420 = vmatprep.subr.mxu0 0.0
    %v421 = vand.u32 %v13, 4294901760
    %422 = vmatpush1.msra.mxu0 %v421
    %423 = vmatprep.subr.mxu0 0.0
    %424 = vmatpush2.msra.mxu0 0.0
    %425 = vmatprep.subr.mxu0 0.0
    %426 = vmatpush2.msra.mxu0 0.0
    %427 = vmatprep.subr.mxu0 0.0
    %428 = vmatpush2.msra.mxu0 0.0
    %429 = vmatprep.subr.mxu0 0.0
    %430 = vmatpush2.msra.mxu0 0.0
    %431 = vmatprep.subr.mxu0 0.0
    %432 = vmatpush2.msra.mxu0 0.0
    %433 = vmatprep.subr.mxu0 0.0
    %434 = vmatpush2.msra.mxu0 0.0
    %435 = vmatprep.subr.mxu0 0.0
    %436 = vmatpush2.msra.mxu0 0.0
    %437 = vmatprep.subr.mxu0 0.0
    %438 = vmatpush2.msra.mxu0 0.0
    %439 = vmatprep.subr.mxu0 0.0
    %440 = vmatpush2.msra.mxu0 0.0
    %441 = vmatprep.subr.mxu0 0.0
    %442 = vmatpush2.msra.mxu0 0.0
    %443 = vmatprep.subr.mxu0 0.0
    %444 = vmatpush2.msra.mxu0 0.0
    %445 = vmatprep.subr.mxu0 0.0
    %446 = vmatpush2.msra.mxu0 0.0
    %447 = vmatprep.subr.mxu0 0.0
    %448 = vmatpush2.msra.mxu0 0.0
    %449 = vmatprep.subr.mxu0 0.0
    %450 = vmatpush2.msra.mxu0 0.0
    %451 = vmatprep.subr.mxu0 0.0
    %452 = vmatpush2.msra.mxu0 0.0
    %453 = vmatprep.subr.mxu0 0.0
    %454 = vmatpush2.msra.mxu0 0.0
    %455 = vmatprep.mubr.f32.mxu0 0.0
    %v456 = vand.u32 %v12, 4294901760
    %v457 = vsub.f32 %v12, %v456
    %v458 = vand.u32 %v457, 4294901760
    %459 = vmatmul.mubr.f32.gmra.mxu0 %v458
    %v460 = vpop.f32.mrf.mxu0
    %v461 = vadd.f32 %v372, %v460
    %v462 = vpop.f32.mrf.mxu0
    %463 = vdwg.mxu0
    %464 = vmatprep.subr.mxu0 0.0
    %v465 = vand.u32 %v28, 4294901760
    %v466 = vsub.f32 %v28, %v465
    %v467 = vand.u32 %v466, 4294901760
    %468 = vmatpush1.msra.mxu0 %v467
    %469 = vmatprep.subr.mxu0 0.0
    %v470 = vand.u32 %v27, 4294901760
    %v471 = vsub.f32 %v27, %v470
    %v472 = vand.u32 %v471, 4294901760
    %473 = vmatpush1.msra.mxu0 %v472
    %474 = vmatprep.subr.mxu0 0.0
    %v475 = vand.u32 %v26, 4294901760
    %v476 = vsub.f32 %v26, %v475
    %v477 = vand.u32 %v476, 4294901760
    %478 = vmatpush1.msra.mxu0 %v477
    %479 = vmatprep.subr.mxu0 0.0
    %v480 = vand.u32 %v25, 4294901760
    %v481 = vsub.f32 %v25, %v480
    %v482 = vand.u32 %v481, 4294901760
    %483 = vmatpush1.msra.mxu0 %v482
    %484 = vmatprep.subr.mxu0 0.0
    %v485 = vand.u32 %v24, 4294901760
    %v486 = vsub.f32 %v24, %v485
    %v487 = vand.u32 %v486, 4294901760
    %488 = vmatpush1.msra.mxu0 %v487
    %489 = vmatprep.subr.mxu0 0.0
    %v490 = vand.u32 %v23, 4294901760
    %v491 = vsub.f32 %v23, %v490
    %v492 = vand.u32 %v491, 4294901760
    %493 = vmatpush1.msra.mxu0 %v492
    %494 = vmatprep.subr.mxu0 0.0
    %v495 = vand.u32 %v22, 4294901760
    %v496 = vsub.f32 %v22, %v495
    %v497 = vand.u32 %v496, 4294901760
    %498 = vmatpush1.msra.mxu0 %v497
    %499 = vmatprep.subr.mxu0 0.0
    %v500 = vand.u32 %v21, 4294901760
    %v501 = vsub.f32 %v21, %v500
    %v502 = vand.u32 %v501, 4294901760
    %503 = vmatpush1.msra.mxu0 %v502
    %504 = vmatprep.subr.mxu0 0.0
    %v505 = vand.u32 %v20, 4294901760
    %v506 = vsub.f32 %v20, %v505
    %v507 = vand.u32 %v506, 4294901760
    %508 = vmatpush1.msra.mxu0 %v507
    %509 = vmatprep.subr.mxu0 0.0
    %v510 = vand.u32 %v19, 4294901760
    %v511 = vsub.f32 %v19, %v510
    %v512 = vand.u32 %v511, 4294901760
    %513 = vmatpush1.msra.mxu0 %v512
    %514 = vmatprep.subr.mxu0 0.0
    %v515 = vand.u32 %v18, 4294901760
    %v516 = vsub.f32 %v18, %v515
    %v517 = vand.u32 %v516, 4294901760
    %518 = vmatpush1.msra.mxu0 %v517
    %519 = vmatprep.subr.mxu0 0.0
    %v520 = vand.u32 %v17, 4294901760
    %v521 = vsub.f32 %v17, %v520
    %v522 = vand.u32 %v521, 4294901760
    %523 = vmatpush1.msra.mxu0 %v522
    %524 = vmatprep.subr.mxu0 0.0
    %v525 = vand.u32 %v16, 4294901760
    %v526 = vsub.f32 %v16, %v525
    %v527 = vand.u32 %v526, 4294901760
    %528 = vmatpush1.msra.mxu0 %v527
    %529 = vmatprep.subr.mxu0 0.0
    %v530 = vand.u32 %v15, 4294901760
    %v531 = vsub.f32 %v15, %v530
    %v532 = vand.u32 %v531, 4294901760
    %533 = vmatpush1.msra.mxu0 %v532
    %534 = vmatprep.subr.mxu0 0.0
    %v535 = vand.u32 %v14, 4294901760
    %v536 = vsub.f32 %v14, %v535
    %v537 = vand.u32 %v536, 4294901760
    %538 = vmatpush1.msra.mxu0 %v537
    %539 = vmatprep.subr.mxu0 0.0
    %v540 = vand.u32 %v13, 4294901760
    %v541 = vsub.f32 %v13, %v540
    %v542 = vand.u32 %v541, 4294901760
    %543 = vmatpush1.msra.mxu0 %v542
    %544 = vmatprep.subr.mxu0 0.0
    %545 = vmatpush2.msra.mxu0 0.0
    %546 = vmatprep.subr.mxu0 0.0
    %547 = vmatpush2.msra.mxu0 0.0
    %548 = vmatprep.subr.mxu0 0.0
    %549 = vmatpush2.msra.mxu0 0.0
    %550 = vmatprep.subr.mxu0 0.0
    %551 = vmatpush2.msra.mxu0 0.0
    %552 = vmatprep.subr.mxu0 0.0
    %553 = vmatpush2.msra.mxu0 0.0
    %554 = vmatprep.subr.mxu0 0.0
    %555 = vmatpush2.msra.mxu0 0.0
    %556 = vmatprep.subr.mxu0 0.0
    %557 = vmatpush2.msra.mxu0 0.0
    %558 = vmatprep.subr.mxu0 0.0
    %559 = vmatpush2.msra.mxu0 0.0
    %560 = vmatprep.subr.mxu0 0.0
    %561 = vmatpush2.msra.mxu0 0.0
    %562 = vmatprep.subr.mxu0 0.0
    %563 = vmatpush2.msra.mxu0 0.0
    %564 = vmatprep.subr.mxu0 0.0
    %565 = vmatpush2.msra.mxu0 0.0
    %566 = vmatprep.subr.mxu0 0.0
    %567 = vmatpush2.msra.mxu0 0.0
    %568 = vmatprep.subr.mxu0 0.0
    %569 = vmatpush2.msra.mxu0 0.0
    %570 = vmatprep.subr.mxu0 0.0
    %571 = vmatpush2.msra.mxu0 0.0
    %572 = vmatprep.subr.mxu0 0.0
    %573 = vmatpush2.msra.mxu0 0.0
    %574 = vmatprep.subr.mxu0 0.0
    %575 = vmatpush2.msra.mxu0 0.0
    %576 = vmatprep.mubr.f32.mxu0 0.0
    %v577 = vand.u32 %v12, 4294901760
    %578 = vmatmul.mubr.f32.gmra.mxu0 %v577
    %v579 = vpop.f32.mrf.mxu0
    %v580 = vadd.f32 %v461, %v579
    %v581 = vpop.f32.mrf.mxu0
    %582 = vdwg.mxu0
    %583 = vmatprep.subr.mxu0 0.0
    %v584 = vand.u32 %v28, 4294901760
    %585 = vmatpush1.msra.mxu0 %v584
    %586 = vmatprep.subr.mxu0 0.0
    %v587 = vand.u32 %v27, 4294901760
    %588 = vmatpush1.msra.mxu0 %v587
    %589 = vmatprep.subr.mxu0 0.0
    %v590 = vand.u32 %v26, 4294901760
    %591 = vmatpush1.msra.mxu0 %v590
    %592 = vmatprep.subr.mxu0 0.0
    %v593 = vand.u32 %v25, 4294901760
    %594 = vmatpush1.msra.mxu0 %v593
    %595 = vmatprep.subr.mxu0 0.0
    %v596 = vand.u32 %v24, 4294901760
    %597 = vmatpush1.msra.mxu0 %v596
    %598 = vmatprep.subr.mxu0 0.0
    %v599 = vand.u32 %v23, 4294901760
    %600 = vmatpush1.msra.mxu0 %v599
    %601 = vmatprep.subr.mxu0 0.0
    %v602 = vand.u32 %v22, 4294901760
    %603 = vmatpush1.msra.mxu0 %v602
    %604 = vmatprep.subr.mxu0 0.0
    %v605 = vand.u32 %v21, 4294901760
    %606 = vmatpush1.msra.mxu0 %v605
    %607 = vmatprep.subr.mxu0 0.0
    %v608 = vand.u32 %v20, 4294901760
    %609 = vmatpush1.msra.mxu0 %v608
    %610 = vmatprep.subr.mxu0 0.0
    %v611 = vand.u32 %v19, 4294901760
    %612 = vmatpush1.msra.mxu0 %v611
    %613 = vmatprep.subr.mxu0 0.0
    %v614 = vand.u32 %v18, 4294901760
    %615 = vmatpush1.msra.mxu0 %v614
    %616 = vmatprep.subr.mxu0 0.0
    %v617 = vand.u32 %v17, 4294901760
    %618 = vmatpush1.msra.mxu0 %v617
    %619 = vmatprep.subr.mxu0 0.0
    %v620 = vand.u32 %v16, 4294901760
    %621 = vmatpush1.msra.mxu0 %v620
    %622 = vmatprep.subr.mxu0 0.0
    %v623 = vand.u32 %v15, 4294901760
    %624 = vmatpush1.msra.mxu0 %v623
    %625 = vmatprep.subr.mxu0 0.0
    %v626 = vand.u32 %v14, 4294901760
    %627 = vmatpush1.msra.mxu0 %v626
    %628 = vmatprep.subr.mxu0 0.0
    %v629 = vand.u32 %v13, 4294901760
    %630 = vmatpush1.msra.mxu0 %v629
    %631 = vmatprep.subr.mxu0 0.0
    %632 = vmatpush2.msra.mxu0 0.0
    %633 = vmatprep.subr.mxu0 0.0
    %634 = vmatpush2.msra.mxu0 0.0
    %635 = vmatprep.subr.mxu0 0.0
    %636 = vmatpush2.msra.mxu0 0.0
    %637 = vmatprep.subr.mxu0 0.0
    %638 = vmatpush2.msra.mxu0 0.0
    %639 = vmatprep.subr.mxu0 0.0
    %640 = vmatpush2.msra.mxu0 0.0
    %641 = vmatprep.subr.mxu0 0.0
    %642 = vmatpush2.msra.mxu0 0.0
    %643 = vmatprep.subr.mxu0 0.0
    %644 = vmatpush2.msra.mxu0 0.0
    %645 = vmatprep.subr.mxu0 0.0
    %646 = vmatpush2.msra.mxu0 0.0
    %647 = vmatprep.subr.mxu0 0.0
    %648 = vmatpush2.msra.mxu0 0.0
    %649 = vmatprep.subr.mxu0 0.0
    %650 = vmatpush2.msra.mxu0 0.0
    %651 = vmatprep.subr.mxu0 0.0
    %652 = vmatpush2.msra.mxu0 0.0
    %653 = vmatprep.subr.mxu0 0.0
    %654 = vmatpush2.msra.mxu0 0.0
    %655 = vmatprep.subr.mxu0 0.0
    %656 = vmatpush2.msra.mxu0 0.0
    %657 = vmatprep.subr.mxu0 0.0
    %658 = vmatpush2.msra.mxu0 0.0
    %659 = vmatprep.subr.mxu0 0.0
    %660 = vmatpush2.msra.mxu0 0.0
    %661 = vmatprep.subr.mxu0 0.0
    %662 = vmatpush2.msra.mxu0 0.0
    %663 = vmatprep.mubr.f32.mxu0 0.0
    %v664 = vand.u32 %v12, 4294901760
    %665 = vmatmul.mubr.f32.gmra.mxu0 %v664
    %v666 = vpop.f32.mrf.mxu0
    %v667 = vadd.f32 %v580, %v666
    %v668 = vpop.f32.mrf.mxu0
    %669 = vdwg.mxu0
    %vm670 = vcmask 57344
    %671 = vst.msk [vmem:[#allocation2] sm:$0x1] %vm670, %v667
    // Predicated region
    $region10: #{tpu_custom_call.1} parent=1 // pred_check
      _
    $region11: #{tpu_custom_call.1} parent=1 // pred_check_branch
      %673 = sbr.rel (0) target = $region13
    $region12: #{tpu_custom_call.1} parent=1 // pred_region
      %s675 = ssub.s32 16, 16
      %676 = vsyncadd [#allocation3], %s675
      %s678 = sshll.u32 [#allocation2], 4
      %s679 = int_to_ptr.vmem [resolvable:$true] %s678
      %681 = dma.vmem_to_hbm [thread:$0]  %s679, 16, %s2, [#allocation3]
    $region13: #{tpu_custom_call.1} parent=1 // pred_fallthru
      _
    // Predicated region
    $region14: #{tpu_custom_call.1} parent=1 // pred_check
      _
    $region15: #{tpu_custom_call.1} parent=1 // pred_check_branch
      %683 = sbr.rel (0) target = $region17
    $region16: #{tpu_custom_call.1} parent=1 // pred_region
      %684 = dma.done [#allocation3], 16
    $region17: #{tpu_custom_call.1} parent=1 // pred_fallthru
      _
    %685 = vsyncpa [#allocation3], 1

</llo_original>
